<compile_context>
chip_gen: v6e
topology: v6e:2x2x1
jax: 0.10.0
libtpu: 0.0.40
codegen_flags: <defaults>
</compile_context>

<pallas_src>
import jax
import jax.numpy as jnp
from jax.experimental import pallas as pl
from jax.experimental.pallas import tpu as pltpu

# Small, TPU-friendly shapes consistent with the module.
B, S, D_MODEL, D_FF = 2, 8, 128, 512


def ffn_kernel(x_ref, w1_ref, b1_ref, w2_ref, b2_ref, out_ref, acc_ref):
    """Grid = (row tiles, d_ffn reduction tiles). d_ffn axis is last / arbitrary."""
    k = pl.program_id(1)

    @pl.when(k == 0)
    def _init():
        acc_ref[...] = jnp.zeros_like(acc_ref)

    # GEMM 1: (row_block, d) x (d, ff_block) -> f32, bias add + ReLU in f32.
    x = x_ref[...].astype(jnp.bfloat16)
    h = jnp.dot(x, w1_ref[...], preferred_element_type=jnp.float32)
    h = jnp.maximum(h + b1_ref[...], 0.0)

    # GEMM 2 partial product over this d_ffn tile, accumulated in f32 scratch.
    acc_ref[...] += jnp.dot(h.astype(jnp.bfloat16), w2_ref[...],
                            preferred_element_type=jnp.float32)

    @pl.when(k == pl.num_programs(1) - 1)
    def _finalize():
        # b2 add + dtype cast only once, on the last reduction step.
        out_ref[...] = (acc_ref[...] + b2_ref[...]).astype(out_ref.dtype)


def positionwise_ffn(x, w1, b1, w2, b2, *, row_block=None, ff_block=None):
    """x: (B, S, D).  w1: (D, D_FF), b1: (D_FF,), w2: (D_FF, D), b2: (D,)."""
    b, s, d = x.shape
    d_ff = w1.shape[1]
    rows = b * s
    x2 = x.reshape(rows, d)                     # fold batch into rows (free, contiguous)

    # Row tiling: single step for small row counts; 256-row tiles (MXU height on
    # v6e/v7x) once the input is big enough to benefit from M tiling.
    if row_block is None:
        row_block = 256 if (rows > 256 and rows % 256 == 0) else rows
    # d_ffn reduction tiling: full block while it is small, <=1024-wide tiles at
    # production sizes so double-buffered weight tiles fit v7x's 64 MiB VMEM
    # (and v5e's scoped default) and weight DMA pipelines with compute.
    if ff_block is None:
        ff_block = d_ff if d_ff <= 1024 else 1024
    assert rows % row_block == 0 and d_ff % ff_block == 0

    n_row = rows // row_block
    n_k = d_ff // ff_block
    grid = (n_row, n_k)
    grid_size = n_row * n_k

    # bf16 weights (dominant HBM traffic); biases stay f32 for the f32 adds.
    w1_bf = w1.astype(jnp.bfloat16)
    w2_bf = w2.astype(jnp.bfloat16)
    b1_2 = jnp.asarray(b1, jnp.float32).reshape(1, d_ff)
    b2_2 = jnp.asarray(b2, jnp.float32).reshape(1, d)

    # Single-buffer any block whose index_map is constant over the whole grid
    # (its DMA never changes, so double-buffering is pure wasted VMEM).
    def mode(invariant):
        return pl.Buffered(1) if (invariant and grid_size > 1) else None

    in_specs = [
        pl.BlockSpec((row_block, d), lambda i, k: (i, 0),
                     pipeline_mode=mode(n_row == 1)),          # x (row-tiled)
        pl.BlockSpec((d, ff_block), lambda i, k: (0, k),
                     pipeline_mode=mode(n_k == 1)),            # W1 (d_ffn-tiled)
        pl.BlockSpec((1, ff_block), lambda i, k: (0, k),
                     pipeline_mode=mode(n_k == 1)),            # b1
        pl.BlockSpec((ff_block, d), lambda i, k: (k, 0),
                     pipeline_mode=mode(n_k == 1)),            # W2 (d_ffn-tiled)
        pl.BlockSpec((1, d), lambda i, k: (0, 0),
                     pipeline_mode=mode(True)),                # b2 (always invariant)
    ]
    out_spec = pl.BlockSpec((row_block, d), lambda i, k: (i, 0))

    # Advisory cost hint so XLA can overlap the custom call with neighboring HLO.
    flops = 4 * rows * d * d_ff                                # 2 GEMMs, 2*M*K*N each
    bytes_accessed = (w1_bf.size * 2 + w2_bf.size * 2          # bf16 weights
                      + x2.size * x2.dtype.itemsize
                      + rows * d * x.dtype.itemsize            # output
                      + b1_2.size * 4 + b2_2.size * 4)
    cost = pl.CostEstimate(flops=flops, transcendentals=0,
                           bytes_accessed=bytes_accessed)

    out = pl.pallas_call(
        ffn_kernel,
        out_shape=jax.ShapeDtypeStruct((rows, d), x.dtype),
        grid_spec=pltpu.PrefetchScalarGridSpec(
            num_scalar_prefetch=0,
            grid=grid,
            in_specs=in_specs,
            out_specs=out_spec,
            scratch_shapes=[pltpu.VMEM((row_block, d), jnp.float32)],   # f32 accumulator
        ),
        compiler_params=pltpu.CompilerParams(
            dimension_semantics=("parallel", "arbitrary"),   # rows parallel, d_ffn reduction
            vmem_limit_bytes=64 * 1024 * 1024,               # v5e scoped default is only 16 MiB
        ),
        cost_estimate=cost,
    )(x2, w1_bf, b1_2, w2_bf, b2_2)
    return out.reshape(b, s, d)


def reference(x, w1, b1, w2, b2):
    """Pure-JAX f32 reference matching PositionwiseFeedForward.forward in eval mode."""
    h = jnp.maximum(x @ w1 + b1, 0.0)
    return h @ w2 + b2


if __name__ == "__main__":
    key = jax.random.PRNGKey(0)
    kx, k1, kb1, k2, kb2 = jax.random.split(key, 5)

    x = jax.random.normal(kx, (B, S, D_MODEL), jnp.float32)
    scale = 0.05
    w1 = scale * jax.random.normal(k1, (D_MODEL, D_FF), jnp.float32)
    b1 = scale * jax.random.normal(kb1, (D_FF,), jnp.float32)
    w2 = scale * jax.random.normal(k2, (D_FF, D_MODEL), jnp.float32)
    b2 = scale * jax.random.normal(kb2, (D_MODEL,), jnp.float32)

    # ff_block=256 -> 2-step reduction grid, exercising the accumulator path
    # (k==0 init / last-k finalize) even at these small shapes.
    out = positionwise_ffn(x, w1, b1, w2, b2, ff_block=256)
    jax.block_until_ready(out)

    ref = reference(x, w1, b1, w2, b2)
    err = float(jnp.max(jnp.abs(out - ref)))
    # bf16 GEMM operands with f32 accumulation: relaxed tolerance vs f32 reference.
    assert jnp.allclose(out, ref, atol=3e-2, rtol=3e-2), f"max abs err {err}"
    print("KERNEL_OK")
</pallas_src>

<mosaic_0001>
module attributes {stable_mosaic.version = 11 : i64} {
  func.func @ffn_kernel(%arg0: i32, %arg1: i32, %arg2: memref<16x128xf32, #tpu.memory_space<vmem>>, %arg3: memref<128x256xbf16, #tpu.memory_space<vmem>>, %arg4: memref<1x256xf32, #tpu.memory_space<vmem>>, %arg5: memref<256x128xbf16, #tpu.memory_space<vmem>>, %arg6: memref<1x128xf32, #tpu.memory_space<vmem>>, %arg7: memref<16x128xf32, #tpu.memory_space<vmem>>, %arg8: memref<16x128xf32, #tpu.memory_space<vmem>>) attributes {dimension_semantics = [#tpu.dimension_semantics<parallel>, #tpu.dimension_semantics<arbitrary>], iteration_bounds = array<i64: 1, 2>, scalar_prefetch = 0 : i64, scratch_operands = 1 : i64, tpu.core_type = #tpu.core_type<tc>, window_params = [{pipeline_mode = #tpu.pipeline_mode<synchronous>, transform_indices = @transform_0, window_bounds = array<i64: 16, 128>}, {transform_indices = @transform_1, window_bounds = array<i64: 128, 256>}, {transform_indices = @transform_2, window_bounds = array<i64: 1, 256>}, {transform_indices = @transform_3, window_bounds = array<i64: 256, 128>}, {pipeline_mode = #tpu.pipeline_mode<synchronous>, transform_indices = @transform_4, window_bounds = array<i64: 1, 128>}, {transform_indices = @transform_5, window_bounds = array<i64: 16, 128>}]} {
    %c0_i32 = arith.constant 0 : i32
    %0 = arith.cmpi eq, %arg1, %c0_i32 : i32
    %1 = arith.extui %0 : i1 to i32
    %c0_i32_0 = arith.constant 0 : i32
    %2 = arith.cmpi ne, %1, %c0_i32_0 : i32
    scf.if %2 {
      %cst_15 = arith.constant 0.000000e+00 : f32
      %21 = vector.broadcast %cst_15 : f32 to vector<16x128xf32>
      %c0_16 = arith.constant 0 : index
      %c0_17 = arith.constant 0 : index
      %22 = vector.load %arg8[%c0_16, %c0_17] : memref<16x128xf32, #tpu.memory_space<vmem>>, vector<16x128xf32>
      tpu.vector_store %arg8[%c0_16, %c0_17], %21 {strides = array<i32>} : memref<16x128xf32, #tpu.memory_space<vmem>>, vector<16x128xf32>,
    } else {
    }
    %c0 = arith.constant 0 : index
    %c0_1 = arith.constant 0 : index
    %3 = vector.load %arg2[%c0, %c0_1] : memref<16x128xf32, #tpu.memory_space<vmem>>, vector<16x128xf32>
    %4 = arith.truncf %3 : vector<16x128xf32> to vector<16x128xbf16>
    %c0_2 = arith.constant 0 : index
    %c0_3 = arith.constant 0 : index
    %5 = vector.load %arg3[%c0_2, %c0_3] : memref<128x256xbf16, #tpu.memory_space<vmem>>, vector<128x256xbf16>
    %cst = arith.constant dense<0.000000e+00> : vector<16x256xf32>
    %6 = tpu.matmul %4, %5, %cst {dimension_numbers = #tpu.dot_dimension_numbers<[1], [0], [0], [1], [0, 0, 1, 1], [], []>} : vector<16x128xbf16>, vector<128x256xbf16>, vector<16x256xf32> -> vector<16x256xf32>
    %c0_4 = arith.constant 0 : index
    %c0_5 = arith.constant 0 : index
    %7 = vector.load %arg4[%c0_4, %c0_5] : memref<1x256xf32, #tpu.memory_space<vmem>>, vector<1x256xf32>
    %8 = vector.broadcast %7 : vector<1x256xf32> to vector<16x256xf32>
    %9 = arith.addf %6, %8 : vector<16x256xf32>
    %cst_6 = arith.constant 0.000000e+00 : f32
    %10 = vector.broadcast %cst_6 : f32 to vector<16x256xf32>
    %11 = arith.maximumf %9, %10 : vector<16x256xf32>
    %c0_7 = arith.constant 0 : index
    %c0_8 = arith.constant 0 : index
    %12 = vector.load %arg8[%c0_7, %c0_8] : memref<16x128xf32, #tpu.memory_space<vmem>>, vector<16x128xf32>
    %13 = arith.truncf %11 : vector<16x256xf32> to vector<16x256xbf16>
    %c0_9 = arith.constant 0 : index
    %c0_10 = arith.constant 0 : index
    %14 = vector.load %arg5[%c0_9, %c0_10] : memref<256x128xbf16, #tpu.memory_space<vmem>>, vector<256x128xbf16>
    %cst_11 = arith.constant dense<0.000000e+00> : vector<16x128xf32>
    %15 = tpu.matmul %13, %14, %cst_11 {dimension_numbers = #tpu.dot_dimension_numbers<[1], [0], [0], [1], [0, 0, 1, 1], [], []>} : vector<16x256xbf16>, vector<256x128xbf16>, vector<16x128xf32> -> vector<16x128xf32>
    %16 = arith.addf %12, %15 : vector<16x128xf32>
    %c0_12 = arith.constant 0 : index
    %c0_13 = arith.constant 0 : index
    %17 = vector.load %arg8[%c0_12, %c0_13] : memref<16x128xf32, #tpu.memory_space<vmem>>, vector<16x128xf32>
    tpu.vector_store %arg8[%c0_12, %c0_13], %16 {strides = array<i32>} : memref<16x128xf32, #tpu.memory_space<vmem>>, vector<16x128xf32>,
    %c1_i32 = arith.constant 1 : i32
    %18 = arith.cmpi eq, %arg1, %c1_i32 : i32
    %19 = arith.extui %18 : i1 to i32
    %c0_i32_14 = arith.constant 0 : i32
    %20 = arith.cmpi ne, %19, %c0_i32_14 : i32
    scf.if %20 {
      %c0_15 = arith.constant 0 : index
      %c0_16 = arith.constant 0 : index
      %21 = vector.load %arg8[%c0_15, %c0_16] : memref<16x128xf32, #tpu.memory_space<vmem>>, vector<16x128xf32>
      %c0_17 = arith.constant 0 : index
      %c0_18 = arith.constant 0 : index
      %22 = vector.load %arg6[%c0_17, %c0_18] : memref<1x128xf32, #tpu.memory_space<vmem>>, vector<1x128xf32>
      %23 = vector.broadcast %22 : vector<1x128xf32> to vector<16x128xf32>
      %24 = arith.addf %21, %23 : vector<16x128xf32>
      %c0_19 = arith.constant 0 : index
      %c0_20 = arith.constant 0 : index
      %25 = vector.load %arg7[%c0_19, %c0_20] : memref<16x128xf32, #tpu.memory_space<vmem>>, vector<16x128xf32>
      tpu.vector_store %arg7[%c0_19, %c0_20], %24 {strides = array<i32>} : memref<16x128xf32, #tpu.memory_space<vmem>>, vector<16x128xf32>,
    } else {
    }
    return
  }
  func.func @transform_0(%arg0: i32, %arg1: i32) -> (i32, i32) {
    %c0_i32 = arith.constant 0 : i32
    %c0_i32_0 = arith.constant 0 : i32
    return %arg0, %c0_i32 : i32, i32
  }
  func.func @transform_1(%arg0: i32, %arg1: i32) -> (i32, i32) {
    %c0_i32 = arith.constant 0 : i32
    %c0_i32_0 = arith.constant 0 : i32
    return %c0_i32, %arg1 : i32, i32
  }
  func.func @transform_2(%arg0: i32, %arg1: i32) -> (i32, i32) {
    %c0_i32 = arith.constant 0 : i32
    %c0_i32_0 = arith.constant 0 : i32
    return %c0_i32, %arg1 : i32, i32
  }
  func.func @transform_3(%arg0: i32, %arg1: i32) -> (i32, i32) {
    %c0_i32 = arith.constant 0 : i32
    %c0_i32_0 = arith.constant 0 : i32
    return %arg1, %c0_i32 : i32, i32
  }
  func.func @transform_4(%arg0: i32, %arg1: i32) -> (i32, i32) {
    %c0_i32 = arith.constant 0 : i32
    %c0_i32_0 = arith.constant 0 : i32
    %c0_i32_1 = arith.constant 0 : i32
    return %c0_i32, %c0_i32_0 : i32, i32
  }
  func.func @transform_5(%arg0: i32, %arg1: i32) -> (i32, i32) {
    %c0_i32 = arith.constant 0 : i32
    %c0_i32_0 = arith.constant 0 : i32
    return %arg0, %c0_i32 : i32, i32
  }
}

</mosaic_0001>

<llo_original>
// kernel: tpu_custom_call.1
$region0: #{tpu_custom_call.1}
  #allocation0 [shape = 'u32[]', space=smem, size = 0x4, offset = 0x4, fixed_abs, tag = 'smem constant byte address 0x4 - core index']
  #allocation1 [shape = 'u32[144,128]{1,0:T(1,128)}', space=vmem, size = 0x12000, scoped, tag = 'internal scratch']
  #allocation2 [shape = 'f32[16,128]{1,0:T(8,128)}', space=vmem, size = 0x2000, scoped, tag = 'scratch operand']
  %s0 = inlined_call_operand.hbm [shape: f32[16,128], index: 0, kind: input, shape index: {}]
  %s1 = inlined_call_operand.hbm [shape: bf16[128,512], index: 1, kind: input, shape index: {}]
  %s2 = inlined_call_operand.hbm [shape: f32[1,512], index: 2, kind: input, shape index: {}]
  %s3 = inlined_call_operand.hbm [shape: bf16[512,128], index: 3, kind: input, shape index: {}]
  %s4 = inlined_call_operand.vmem [shape: f32[1,128], index: 4, kind: input, shape index: {}]
  %s5 = inlined_call_operand.hbm [shape: f32[16,128], index: 5, kind: output, shape index: {}]
  %s6 = sld [smem:[#allocation0]]
  $region77: #{tpu_custom_call.1} parent=0
    _
  %s8 = ssub.s32 1, %s6
  %s9 = scalar_select 0, %s8, %s6
  $region1: #{tpu_custom_call.1} parent=0
    #allocation3 [shape = 'u8[8192]{0}', space=vmem, size = 0x2000, scoped, tag = 'input window, operand 0, single buffered']
    #allocation4 [shape = 's32[2]{0}', space=sflag, size = 0x8, scoped, tag = 'scoped memory for tpu_custom_call.1']
    #allocation5 [shape = 's32[2]{0}', space=sflag, size = 0x8, scoped, tag = 'scoped memory for tpu_custom_call.1']
    #allocation6 [shape = 'u8[131072]{0}', space=vmem, size = 0x20000, scoped, tag = 'input window, operand 1']
    #allocation7 [shape = 's32[2]{0}', space=sflag, size = 0x8, scoped, tag = 'scoped memory for tpu_custom_call.1']
    #allocation8 [shape = 'u8[2048]{0}', space=vmem, size = 0x800, scoped, tag = 'input window, operand 2']
    #allocation9 [shape = 'u8[131072]{0}', space=vmem, size = 0x20000, scoped, tag = 'input window, operand 3']
    #allocation10 [shape = 's32[2]{0}', space=sflag, size = 0x8, scoped, tag = 'scoped memory for tpu_custom_call.1']
    #allocation11 [shape = 'u8[8192]{0}', space=vmem, size = 0x2000, scoped, tag = 'output window, operand 0, single buffered']
    %10 = vsyncpa [#allocation4], 0
    %11 = vsyncpa [#allocation7], 0
    %s12 = scalar_lea.sflag [#allocation7], 1
    %13 = vsyncpa %s12, 0
    %14 = vsyncpa [#allocation10], 0
    %s15 = scalar_lea.sflag [#allocation10], 1
    %16 = vsyncpa %s15, 0
    %17 = vsyncpa [#allocation5], 0
    loop: start=0, step=1, limit=4
    $region2: #{tpu_custom_call.1} parent=1 // loop_pre_header
      _
    $region3: #{tpu_custom_call.1} parent=1 // loop_header
      %s19 = sphi 0, %s23
      %p20 = scmp.ge.s32.totalorder %s19, 4
      %s26 = sphi 0, %s38
      %s27 = sphi 0, %s34
      %s28 = sphi 0, %s26
      %s29 = sphi 0, %s27
      %s30 = sphi 0, %s28
      %s31 = sphi 0, %s29
      %s41 = sphi 0, %s43
      %s44 = sphi 0, %s41
      %s45 = sphi 0, %s44
      %s61 = sphi 0, %s45
      %s67 = sphi 0, %s69
      %s70 = sphi 0, %s67
      %s71 = sphi 0, %s70
      %s87 = sphi 0, %s71
      %s93 = sphi 0, %s95
      %s96 = sphi 0, %s93
      %s97 = sphi 0, %s96
      %s113 = sphi 0, %s97
      %s119 = sphi 0, %s121
      %s122 = sphi 0, %s119
      %s123 = sphi 0, %s122
      %s139 = sphi 0, %s123
      %s143 = sphi 0, %s143
      %s145 = sphi 0, %s143
      %s146 = sphi 0, %s145
      %s160 = sphi 0, %s146
      %s166 = sphi 0, %s168
      %s169 = sphi 0, %s166
      %s170 = sphi 0, %s169
      %s186 = sphi 0, %s170
    $region4: #{tpu_custom_call.1} parent=1 // loop_header_branch
      %22 = sbr.rel (%p20) target = $region8
    $region5: #{tpu_custom_call.1} parent=1 // loop_body
      %s24 = ssub.s32 %s19, 1
      %s25 = ssub.s32 %s19, 2
      %s32 = sadd.s32 1, %s27
      %p33 = scmp.ge.s32.totalorder %s32, 2
      %s34 = scalar_select %p33, 0, %s32
      %s35 = sadd.s32 1, %s26
      %s36 = scalar_select %p33, %s35, %s26
      %p37 = scmp.ge.s32.totalorder %s36, 1
      %s38 = scalar_select %p37, 0, %s36
      %s39 = ssub.s32 %s26, %s38
      %p40 = scmp.eq.s32.totalorder %s39, 0
      %s42 = sadd.s32 %s41, 1
      %s43 = scalar_select %p40, %s41, %s42
      %p46 = pneg %p40
      %p47 = scmp.eq.s32.totalorder %s19, 1
      %p48 = por %p46, %p47
      %p49 = scmp.ne.s32.totalorder %s41, %s44
      %p50 = scmp.eq.s32.totalorder %s19, 0
      %p51 = por %p49, %p50
      %p52 = scmp.ne.s32.totalorder %s41, %s44
      %p53 = scmp.eq.s32.totalorder %s24, 1
      %p54 = por %p52, %p53
      %p55 = scmp.ne.s32.totalorder %s44, %s45
      %p56 = scmp.eq.s32.totalorder %s24, 0
      %p57 = por %p55, %p56
      %p58 = scmp.ne.s32.totalorder %s44, %s45
      %p59 = scmp.eq.s32.totalorder %s25, 1
      %p60 = por %p58, %p59
      %p62 = scmp.ne.s32.totalorder %s45, %s61
      %p63 = scmp.eq.s32.totalorder %s25, 0
      %p64 = por %p62, %p63
      %s65 = ssub.s32 %s27, %s34
      %p66 = scmp.eq.s32.totalorder %s65, 0
      %s68 = sadd.s32 %s67, 1
      %s69 = scalar_select %p66, %s67, %s68
      %p72 = pneg %p66
      %p73 = scmp.eq.s32.totalorder %s19, 1
      %p74 = por %p72, %p73
      %p75 = scmp.ne.s32.totalorder %s67, %s70
      %p76 = scmp.eq.s32.totalorder %s19, 0
      %p77 = por %p75, %p76
      %p78 = scmp.ne.s32.totalorder %s67, %s70
      %p79 = scmp.eq.s32.totalorder %s24, 1
      %p80 = por %p78, %p79
      %p81 = scmp.ne.s32.totalorder %s70, %s71
      %p82 = scmp.eq.s32.totalorder %s24, 0
      %p83 = por %p81, %p82
      %p84 = scmp.ne.s32.totalorder %s70, %s71
      %p85 = scmp.eq.s32.totalorder %s25, 1
      %p86 = por %p84, %p85
      %p88 = scmp.ne.s32.totalorder %s71, %s87
      %p89 = scmp.eq.s32.totalorder %s25, 0
      %p90 = por %p88, %p89
      %s91 = ssub.s32 %s27, %s34
      %p92 = scmp.eq.s32.totalorder %s91, 0
      %s94 = sadd.s32 %s93, 1
      %s95 = scalar_select %p92, %s93, %s94
      %p98 = pneg %p92
      %p99 = scmp.eq.s32.totalorder %s19, 1
      %p100 = por %p98, %p99
      %p101 = scmp.ne.s32.totalorder %s93, %s96
      %p102 = scmp.eq.s32.totalorder %s19, 0
      %p103 = por %p101, %p102
      %p104 = scmp.ne.s32.totalorder %s93, %s96
      %p105 = scmp.eq.s32.totalorder %s24, 1
      %p106 = por %p104, %p105
      %p107 = scmp.ne.s32.totalorder %s96, %s97
      %p108 = scmp.eq.s32.totalorder %s24, 0
      %p109 = por %p107, %p108
      %p110 = scmp.ne.s32.totalorder %s96, %s97
      %p111 = scmp.eq.s32.totalorder %s25, 1
      %p112 = por %p110, %p111
      %p114 = scmp.ne.s32.totalorder %s97, %s113
      %p115 = scmp.eq.s32.totalorder %s25, 0
      %p116 = por %p114, %p115
      %s117 = ssub.s32 %s27, %s34
      %p118 = scmp.eq.s32.totalorder %s117, 0
      %s120 = sadd.s32 %s119, 1
      %s121 = scalar_select %p118, %s119, %s120
      %p124 = pneg %p118
      %p125 = scmp.eq.s32.totalorder %s19, 1
      %p126 = por %p124, %p125
      %p127 = scmp.ne.s32.totalorder %s119, %s122
      %p128 = scmp.eq.s32.totalorder %s19, 0
      %p129 = por %p127, %p128
      %p130 = scmp.ne.s32.totalorder %s119, %s122
      %p131 = scmp.eq.s32.totalorder %s24, 1
      %p132 = por %p130, %p131
      %p133 = scmp.ne.s32.totalorder %s122, %s123
      %p134 = scmp.eq.s32.totalorder %s24, 0
      %p135 = por %p133, %p134
      %p136 = scmp.ne.s32.totalorder %s122, %s123
      %p137 = scmp.eq.s32.totalorder %s25, 1
      %p138 = por %p136, %p137
      %p140 = scmp.ne.s32.totalorder %s123, %s139
      %p141 = scmp.eq.s32.totalorder %s25, 0
      %p142 = por %p140, %p141
      %s144 = sadd.s32 %s143, 1
      %p147 = scmp.eq.s32.totalorder %s19, 1
      %p148 = scmp.ne.s32.totalorder %s143, %s145
      %p149 = scmp.eq.s32.totalorder %s19, 0
      %p150 = por %p148, %p149
      %p151 = scmp.ne.s32.totalorder %s143, %s145
      %p152 = scmp.eq.s32.totalorder %s24, 1
      %p153 = por %p151, %p152
      %p154 = scmp.ne.s32.totalorder %s145, %s146
      %p155 = scmp.eq.s32.totalorder %s24, 0
      %p156 = por %p154, %p155
      %p157 = scmp.ne.s32.totalorder %s145, %s146
      %p158 = scmp.eq.s32.totalorder %s25, 1
      %p159 = por %p157, %p158
      %p161 = scmp.ne.s32.totalorder %s146, %s160
      %p162 = scmp.eq.s32.totalorder %s25, 0
      %p163 = por %p161, %p162
      %s164 = ssub.s32 %s26, %s38
      %p165 = scmp.eq.s32.totalorder %s164, 0
      %s167 = sadd.s32 %s166, 1
      %s168 = scalar_select %p165, %s166, %s167
      %p171 = pneg %p165
      %p172 = scmp.eq.s32.totalorder %s19, 1
      %p173 = por %p171, %p172
      %p174 = scmp.ne.s32.totalorder %s166, %s169
      %p175 = scmp.eq.s32.totalorder %s19, 0
      %p176 = por %p174, %p175
      %p177 = scmp.ne.s32.totalorder %s166, %s169
      %p178 = scmp.eq.s32.totalorder %s24, 1
      %p179 = por %p177, %p178
      %p180 = scmp.ne.s32.totalorder %s169, %s170
      %p181 = scmp.eq.s32.totalorder %s24, 0
      %p182 = por %p180, %p181
      %p183 = scmp.ne.s32.totalorder %s169, %s170
      %p184 = scmp.eq.s32.totalorder %s25, 1
      %p185 = por %p183, %p184
      %p187 = scmp.ne.s32.totalorder %s170, %s186
      %p188 = scmp.eq.s32.totalorder %s25, 0
      %p189 = por %p187, %p188
      %p190 = scmp.le.s32.totalorder 1, %s19
      %p191 = scmp.lt.s32.totalorder %s19, 3
      %p192 = pnand %p190, %p191
      %p193 = pneg %p192
      // Predicated region
      $region9: #{tpu_custom_call.1} parent=5 // pred_check
        _
      $region10: #{tpu_custom_call.1} parent=5 // pred_check_branch
        %195 = sbr.rel (%p192) target = $region12
      $region11: #{tpu_custom_call.1} parent=5 // pred_region
        %s196 = ssub.s32 %s19, 1
        // Predicated region
        $region13: #{tpu_custom_call.1} parent=11 // pred_check
          %p197 = pneg %p57
        $region14: #{tpu_custom_call.1} parent=11 // pred_check_branch
          %199 = sbr.rel (%p197) target = $region16
        $region15: #{tpu_custom_call.1} parent=11 // pred_region
          %s200 = smul.u32 2, %s28
          %s202 = ssub.s32 256, 256
          %203 = vsyncadd [#allocation4], %s202
          %s204 = smul.addr %s200, 128
          %s205 = scalar_lea.hbm %s0, %s204
          %s206 = sshll.u32 [#allocation3], 4
          %s207 = int_to_ptr.vmem [resolvable:$true] %s206
          %212 = dma.hbm_to_vmem [thread:$0]  %s205, 256, %s207, [#allocation4], 128, 128, 8
        $region16: #{tpu_custom_call.1} parent=11 // pred_fallthru
          _
        // Predicated region
        $region17: #{tpu_custom_call.1} parent=11 // pred_check
          %p213 = pneg %p156
        $region18: #{tpu_custom_call.1} parent=11 // pred_check_branch
          %215 = sbr.rel (%p213) target = $region20
        $region19: #{tpu_custom_call.1} parent=11 // pred_region
          _
        $region20: #{tpu_custom_call.1} parent=11 // pred_fallthru
          _
      $region12: #{tpu_custom_call.1} parent=5 // pred_fallthru
        _
      %p216 = scmp.lt.s32.totalorder %s19, 2
      // Predicated region
      $region21: #{tpu_custom_call.1} parent=5 // pred_check
        %p217 = pneg %p216
      $region22: #{tpu_custom_call.1} parent=5 // pred_check_branch
        %219 = sbr.rel (%p217) target = $region24
      $region23: #{tpu_custom_call.1} parent=5 // pred_region
        // Predicated region
        $region25: #{tpu_custom_call.1} parent=23 // pred_check
          %p220 = pneg %p77
        $region26: #{tpu_custom_call.1} parent=23 // pred_check_branch
          %222 = sbr.rel (%p220) target = $region28
        $region27: #{tpu_custom_call.1} parent=23 // pred_region
          %s223 = sand.u32 %s19, 1
          %s224 = scalar_lea.sflag [#allocation7], %s223
          %s225 = sand.u32 %s67, 1
          %s226 = smul.addr %s225, 128
          %s227 = scalar_lea.vmem [#allocation6], %s226
          %s228 = smul.u32 2, %s27
          %s230 = ssub.s32 2048, 2048
          %231 = vsyncadd %s224, %s230
          %s232 = smul.addr %s228, 64
          %s233 = scalar_lea.hbm %s1, %s232
          %s234 = sshll.u32 %s227, 4
          %s235 = int_to_ptr.vmem [resolvable:$true] %s234
          %240 = dma.hbm_to_vmem [thread:$0]  %s233, 2048, %s235, %s224, 256, 128, 8
        $region28: #{tpu_custom_call.1} parent=23 // pred_fallthru
          _
        // Predicated region
        $region29: #{tpu_custom_call.1} parent=23 // pred_check
          %p241 = pneg %p103
        $region30: #{tpu_custom_call.1} parent=23 // pred_check_branch
          %243 = sbr.rel (%p241) target = $region32
        $region31: #{tpu_custom_call.1} parent=23 // pred_region
          %s244 = sand.u32 %s19, 1
          %s245 = scalar_lea.sflag [#allocation7], %s244
          %s246 = sand.u32 %s93, 1
          %s247 = smul.addr %s246, 2
          %s248 = scalar_lea.vmem [#allocation8], %s247
          %s249 = smul.u32 2, %s27
          %s251 = ssub.s32 32, 32
          %252 = vsyncadd %s245, %s251
          %s253 = smul.addr %s249, 16
          %s254 = scalar_lea.hbm %s2, %s253
          %s256 = sshll.u32 %s248, 4
          %s257 = int_to_ptr.vmem [resolvable:$true] %s256
          %259 = dma.hbm_to_vmem [thread:$0]  %s254, 32, %s257, %s245
        $region32: #{tpu_custom_call.1} parent=23 // pred_fallthru
          _
        // Predicated region
        $region33: #{tpu_custom_call.1} parent=23 // pred_check
          %p260 = pneg %p129
        $region34: #{tpu_custom_call.1} parent=23 // pred_check_branch
          %262 = sbr.rel (%p260) target = $region36
        $region35: #{tpu_custom_call.1} parent=23 // pred_region
          %s263 = sand.u32 %s119, 1
          %s264 = scalar_lea.sflag [#allocation10], %s263
          %s265 = sand.u32 %s119, 1
          %s266 = smul.addr %s265, 128
          %s267 = scalar_lea.vmem [#allocation9], %s266
          %s268 = smul.u32 32, %s27
          %s270 = ssub.s32 2048, 2048
          %271 = vsyncadd %s264, %s270
          %s272 = smul.addr %s268, 64
          %s273 = scalar_lea.hbm %s3, %s272
          %s274 = sshll.u32 %s267, 4
          %s275 = int_to_ptr.vmem [resolvable:$true] %s274
          %280 = dma.hbm_to_vmem [thread:$0]  %s273, 2048, %s275, %s264, 64, 64, 4
        $region36: #{tpu_custom_call.1} parent=23 // pred_fallthru
          _
      $region24: #{tpu_custom_call.1} parent=5 // pred_fallthru
        _
      %p281 = scmp.le.s32.totalorder 1, %s19
      %p282 = scmp.lt.s32.totalorder %s19, 3
      %p283 = pnand %p281, %p282
      %p284 = pneg %p283
      // Predicated region
      $region37: #{tpu_custom_call.1} parent=5 // pred_check
        _
      $region38: #{tpu_custom_call.1} parent=5 // pred_check_branch
        %286 = sbr.rel (%p283) target = $region40
      $region39: #{tpu_custom_call.1} parent=5 // pred_region
        %s287 = ssub.s32 %s19, 1
        // Predicated region
        $region41: #{tpu_custom_call.1} parent=39 // pred_check
          %p288 = pneg %p57
        $region42: #{tpu_custom_call.1} parent=39 // pred_check_branch
          %290 = sbr.rel (%p288) target = $region44
        $region43: #{tpu_custom_call.1} parent=39 // pred_region
          %291 = dma.done [#allocation4], 256
        $region44: #{tpu_custom_call.1} parent=39 // pred_fallthru
          _
        %s292 = sand.u32 %s24, 1
        %s293 = scalar_lea.sflag [#allocation7], %s292
        %s294 = sand.u32 %s70, 1
        %s295 = smul.addr %s294, 128
        %s296 = scalar_lea.vmem [#allocation6], %s295
        // Predicated region
        $region45: #{tpu_custom_call.1} parent=39 // pred_check
          %p297 = pneg %p83
        $region46: #{tpu_custom_call.1} parent=39 // pred_check_branch
          %299 = sbr.rel (%p297) target = $region48
        $region47: #{tpu_custom_call.1} parent=39 // pred_region
          %300 = dma.done %s293, 2048
        $region48: #{tpu_custom_call.1} parent=39 // pred_fallthru
          _
        %s301 = sand.u32 %s24, 1
        %s302 = scalar_lea.sflag [#allocation7], %s301
        %s303 = sand.u32 %s96, 1
        %s304 = smul.addr %s303, 2
        %s305 = scalar_lea.vmem [#allocation8], %s304
        // Predicated region
        $region49: #{tpu_custom_call.1} parent=39 // pred_check
          %p306 = pneg %p109
        $region50: #{tpu_custom_call.1} parent=39 // pred_check_branch
          %308 = sbr.rel (%p306) target = $region52
        $region51: #{tpu_custom_call.1} parent=39 // pred_region
          %309 = dma.done %s302, 32
        $region52: #{tpu_custom_call.1} parent=39 // pred_fallthru
          _
        %s310 = sand.u32 %s122, 1
        %s311 = scalar_lea.sflag [#allocation10], %s310
        %s312 = sand.u32 %s122, 1
        %s313 = smul.addr %s312, 128
        %s314 = scalar_lea.vmem [#allocation9], %s313
        // Predicated region
        $region53: #{tpu_custom_call.1} parent=39 // pred_check
          %p315 = pneg %p135
        $region54: #{tpu_custom_call.1} parent=39 // pred_check_branch
          %317 = sbr.rel (%p315) target = $region56
        $region55: #{tpu_custom_call.1} parent=39 // pred_region
          %318 = dma.done %s311, 2048
        $region56: #{tpu_custom_call.1} parent=39 // pred_fallthru
          _
        %p319 = pneg %p57
        %p320 = pneg %p54
        %s321 = sand.u32 %s24, 1
        %s322 = scalar_lea.sflag [#allocation7], %s321
        %s323 = sand.u32 %s70, 1
        %s324 = smul.addr %s323, 128
        %s325 = scalar_lea.vmem [#allocation6], %s324
        %p326 = pneg %p83
        %p327 = pneg %p80
        %s328 = sand.u32 %s24, 1
        %s329 = scalar_lea.sflag [#allocation7], %s328
        %s330 = sand.u32 %s96, 1
        %s331 = smul.addr %s330, 2
        %s332 = scalar_lea.vmem [#allocation8], %s331
        %p333 = pneg %p109
        %p334 = pneg %p106
        %s335 = sand.u32 %s122, 1
        %s336 = scalar_lea.sflag [#allocation10], %s335
        %s337 = sand.u32 %s122, 1
        %s338 = smul.addr %s337, 128
        %s339 = scalar_lea.vmem [#allocation9], %s338
        %p340 = pneg %p135
        %p341 = pneg %p132
        %p342 = pneg %p156
        %p343 = pneg %p153
        %p344 = pneg %p182
        %p345 = pneg %p179
        %s346 = smul.u32 2, %s28
        %s347 = smul.u32 2, %s29
        %s348 = smul.u32 2, %s29
        %s349 = smul.u32 32, %s29
        %s350 = smul.u32 2, %s28
        %p352 = scmp.eq.s32.totalorder %s29, 0
        // Predicated region
        $region57: #{tpu_custom_call.1} parent=39 // pred_check
          %p353 = pneg %p352
        $region58: #{tpu_custom_call.1} parent=39 // pred_check_branch
          %355 = sbr.rel (%p353) target = $region60
        $region59: #{tpu_custom_call.1} parent=39 // pred_region
          %356 = vst [vmem:[#allocation2] sm:$0xff] 0.0
          %357 = vst [vmem:[#allocation2 + $0x8] sm:$0xff] 0.0
        $region60: #{tpu_custom_call.1} parent=39 // pred_fallthru
          _
        %v358 = vld [vmem:[#allocation3] sm:$0xff]
        %v359 = vld [vmem:[#allocation3 + $0x8] sm:$0xff]
        %v360 = vpack.c.bf16 %v359, %v358
        %v361 = vld [vmem:[%s296] sm:$0xff]
        %v362 = vld [vmem:[%s296 + $0x8] sm:$0xff]
        %v363 = vld [vmem:[%s296 + $0x10] sm:$0xff]
        %v364 = vld [vmem:[%s296 + $0x18] sm:$0xff]
        %v365 = vld [vmem:[%s296 + $0x20] sm:$0xff]
        %v366 = vld [vmem:[%s296 + $0x28] sm:$0xff]
        %v367 = vld [vmem:[%s296 + $0x30] sm:$0xff]
        %v368 = vld [vmem:[%s296 + $0x38] sm:$0xff]
        %v369 = vld [vmem:[%s296 + $0x40] sm:$0xff]
        %v370 = vld [vmem:[%s296 + $0x48] sm:$0xff]
        %v371 = vld [vmem:[%s296 + $0x50] sm:$0xff]
        %v372 = vld [vmem:[%s296 + $0x58] sm:$0xff]
        %v373 = vld [vmem:[%s296 + $0x60] sm:$0xff]
        %v374 = vld [vmem:[%s296 + $0x68] sm:$0xff]
        %v375 = vld [vmem:[%s296 + $0x70] sm:$0xff]
        %v376 = vld [vmem:[%s296 + $0x78] sm:$0xff]
        %v377 = vld [vmem:[%s305] sm:$0x3]
        %v379 = vlaneseq
        %v380 = vshrl.u32 %v379, 7
        %v381 = vsub.s32 0, %v380
        %v382 = vrot.slane %v377, %v381
        %v383 = vlaneseq
        %v384 = vshrl.u32 %v383, 7
        %v385 = vsub.s32 1, %v384
        %v386 = vrot.slane %v377, %v385
        %v405 = vunpack.c.l.b16 %v361
        %v406 = vunpack.c.h.b16 %v361
        %v407 = vunpack.c.l.b16 %v362
        %v408 = vunpack.c.h.b16 %v362
        %v409 = vunpack.c.l.b16 %v363
        %v410 = vunpack.c.h.b16 %v363
        %v411 = vunpack.c.l.b16 %v364
        %v412 = vunpack.c.h.b16 %v364
        %v413 = vunpack.c.l.b16 %v365
        %v414 = vunpack.c.h.b16 %v365
        %v415 = vunpack.c.l.b16 %v366
        %v416 = vunpack.c.h.b16 %v366
        %v417 = vunpack.c.l.b16 %v367
        %v418 = vunpack.c.h.b16 %v367
        %v419 = vunpack.c.l.b16 %v368
        %v420 = vunpack.c.h.b16 %v368
        %v421 = vunpack.c.l.b16 %v369
        %v422 = vunpack.c.h.b16 %v369
        %v423 = vunpack.c.l.b16 %v370
        %v424 = vunpack.c.h.b16 %v370
        %v425 = vunpack.c.l.b16 %v371
        %v426 = vunpack.c.h.b16 %v371
        %v427 = vunpack.c.l.b16 %v372
        %v428 = vunpack.c.h.b16 %v372
        %v429 = vunpack.c.l.b16 %v373
        %v430 = vunpack.c.h.b16 %v373
        %v431 = vunpack.c.l.b16 %v374
        %v432 = vunpack.c.h.b16 %v374
        %v433 = vunpack.c.l.b16 %v375
        %v434 = vunpack.c.h.b16 %v375
        %v435 = vunpack.c.l.b16 %v376
        %v436 = vunpack.c.h.b16 %v376
        %v437 = vpack.c.b16 %v407, %v405
        %v438 = vpack.c.b16 %v408, %v406
        %v439 = vpack.c.b16 %v411, %v409
        %v440 = vpack.c.b16 %v412, %v410
        %v441 = vpack.c.b16 %v415, %v413
        %v442 = vpack.c.b16 %v416, %v414
        %v443 = vpack.c.b16 %v419, %v417
        %v444 = vpack.c.b16 %v420, %v418
        %v445 = vpack.c.b16 %v423, %v421
        %v446 = vpack.c.b16 %v424, %v422
        %v447 = vpack.c.b16 %v427, %v425
        %v448 = vpack.c.b16 %v428, %v426
        %v449 = vpack.c.b16 %v431, %v429
        %v450 = vpack.c.b16 %v432, %v430
        %v451 = vpack.c.b16 %v435, %v433
        %v452 = vpack.c.b16 %v436, %v434
        %469 = vmatprep.subr.bf16.mxu0 %v452
        %470 = vmatpush1.bf16.msra.mxu0 %v451
        %471 = vmatprep.subr.bf16.mxu0 %v450
        %472 = vmatpush1.bf16.msra.mxu0 %v449
        %473 = vmatprep.subr.bf16.mxu0 %v448
        %474 = vmatpush1.bf16.msra.mxu0 %v447
        %475 = vmatprep.subr.bf16.mxu0 %v446
        %476 = vmatpush1.bf16.msra.mxu0 %v445
        %477 = vmatprep.subr.bf16.mxu0 %v444
        %478 = vmatpush1.bf16.msra.mxu0 %v443
        %479 = vmatprep.subr.bf16.mxu0 %v442
        %480 = vmatpush1.bf16.msra.mxu0 %v441
        %481 = vmatprep.subr.bf16.mxu0 %v440
        %482 = vmatpush1.bf16.msra.mxu0 %v439
        %483 = vmatprep.subr.bf16.mxu0 %v438
        %484 = vmatpush1.bf16.msra.mxu0 %v437
        %485 = vmatprep.subr.bf16.mxu0 0
        %486 = vmatpush2.bf16.msra.mxu0 0
        %487 = vmatprep.subr.bf16.mxu0 0
        %488 = vmatpush2.bf16.msra.mxu0 0
        %489 = vmatprep.subr.bf16.mxu0 0
        %490 = vmatpush2.bf16.msra.mxu0 0
        %491 = vmatprep.subr.bf16.mxu0 0
        %492 = vmatpush2.bf16.msra.mxu0 0
        %493 = vmatprep.subr.bf16.mxu0 0
        %494 = vmatpush2.bf16.msra.mxu0 0
        %495 = vmatprep.subr.bf16.mxu0 0
        %496 = vmatpush2.bf16.msra.mxu0 0
        %497 = vmatprep.subr.bf16.mxu0 0
        %498 = vmatpush2.bf16.msra.mxu0 0
        %499 = vmatprep.subr.bf16.mxu0 0
        %500 = vmatpush2.bf16.msra.mxu0 0
        %501 = vmatprep.mubr.bf16.mxu0 0
        %502 = vmatmul.mubr.bf16.gmra.mxu0 %v360
        %v503 = vpop.f32.mrf.mxu0
        %v504 = vadd.f32 %v382, %v503
        %v505 = vpop.f32.mrf.mxu0
        %v506 = vadd.f32 %v386, %v505
        %v507 = vpop.f32.mrf.mxu0
        %v508 = vadd.f32 %v382, %v507
        %v509 = vpop.f32.mrf.mxu0
        %v510 = vadd.f32 %v386, %v509
        %511 = vdwg.mxu0
        %v512 = vmax.f32 %v504, 0.0
        %v513 = vmax.f32 %v506, 0.0
        %v514 = vmax.f32 %v508, 0.0
        %v515 = vmax.f32 %v510, 0.0
        %v516 = vld [vmem:[#allocation2] sm:$0xff]
        %v517 = vld [vmem:[#allocation2 + $0x8] sm:$0xff]
        %v518 = vpack.c.bf16 %v514, %v512
        %v519 = vpack.c.bf16 %v515, %v513
        %v520 = vld [vmem:[%s314] sm:$0xf]
        %v521 = vld [vmem:[%s314 + $0x4] sm:$0xf]
        %v522 = vld [vmem:[%s314 + $0x8] sm:$0xf]
        %v523 = vld [vmem:[%s314 + $0xc] sm:$0xf]
        %v524 = vld [vmem:[%s314 + $0x10] sm:$0xf]
        %v525 = vld [vmem:[%s314 + $0x14] sm:$0xf]
        %v526 = vld [vmem:[%s314 + $0x18] sm:$0xf]
        %v527 = vld [vmem:[%s314 + $0x1c] sm:$0xf]
        %v528 = vld [vmem:[%s314 + $0x20] sm:$0xf]
        %v529 = vld [vmem:[%s314 + $0x24] sm:$0xf]
        %v530 = vld [vmem:[%s314 + $0x28] sm:$0xf]
        %v531 = vld [vmem:[%s314 + $0x2c] sm:$0xf]
        %v532 = vld [vmem:[%s314 + $0x30] sm:$0xf]
        %v533 = vld [vmem:[%s314 + $0x34] sm:$0xf]
        %v534 = vld [vmem:[%s314 + $0x38] sm:$0xf]
        %v535 = vld [vmem:[%s314 + $0x3c] sm:$0xf]
        %v536 = vld [vmem:[%s314 + $0x40] sm:$0xf]
        %v537 = vld [vmem:[%s314 + $0x44] sm:$0xf]
        %v538 = vld [vmem:[%s314 + $0x48] sm:$0xf]
        %v539 = vld [vmem:[%s314 + $0x4c] sm:$0xf]
        %v540 = vld [vmem:[%s314 + $0x50] sm:$0xf]
        %v541 = vld [vmem:[%s314 + $0x54] sm:$0xf]
        %v542 = vld [vmem:[%s314 + $0x58] sm:$0xf]
        %v543 = vld [vmem:[%s314 + $0x5c] sm:$0xf]
        %v544 = vld [vmem:[%s314 + $0x60] sm:$0xf]
        %v545 = vld [vmem:[%s314 + $0x64] sm:$0xf]
        %v546 = vld [vmem:[%s314 + $0x68] sm:$0xf]
        %v547 = vld [vmem:[%s314 + $0x6c] sm:$0xf]
        %v548 = vld [vmem:[%s314 + $0x70] sm:$0xf]
        %v549 = vld [vmem:[%s314 + $0x74] sm:$0xf]
        %v550 = vld [vmem:[%s314 + $0x78] sm:$0xf]
        %v551 = vld [vmem:[%s314 + $0x7c] sm:$0xf]
        %v584 = vunpack.c.l.b16 %v520
        %v585 = vunpack.c.l.b16 %v521
        %v586 = vunpack.c.l.b16 %v522
        %v587 = vunpack.c.l.b16 %v523
        %v588 = vunpack.c.l.b16 %v524
        %v589 = vunpack.c.l.b16 %v525
        %v590 = vunpack.c.l.b16 %v526
        %v591 = vunpack.c.l.b16 %v527
        %v592 = vunpack.c.l.b16 %v528
        %v593 = vunpack.c.l.b16 %v529
        %v594 = vunpack.c.l.b16 %v530
        %v595 = vunpack.c.l.b16 %v531
        %v596 = vunpack.c.l.b16 %v532
        %v597 = vunpack.c.l.b16 %v533
        %v598 = vunpack.c.l.b16 %v534
        %v599 = vunpack.c.l.b16 %v535
        %v600 = vunpack.c.l.b16 %v536
        %v601 = vunpack.c.l.b16 %v537
        %v602 = vunpack.c.l.b16 %v538
        %v603 = vunpack.c.l.b16 %v539
        %v604 = vunpack.c.l.b16 %v540
        %v605 = vunpack.c.l.b16 %v541
        %v606 = vunpack.c.l.b16 %v542
        %v607 = vunpack.c.l.b16 %v543
        %v608 = vunpack.c.l.b16 %v544
        %v609 = vunpack.c.l.b16 %v545
        %v610 = vunpack.c.l.b16 %v546
        %v611 = vunpack.c.l.b16 %v547
        %v612 = vunpack.c.l.b16 %v548
        %v613 = vunpack.c.l.b16 %v549
        %v614 = vunpack.c.l.b16 %v550
        %v615 = vunpack.c.l.b16 %v551
        %v616 = vpack.c.b16 %v585, %v584
        %v617 = vpack.c.b16 %v587, %v586
        %v618 = vpack.c.b16 %v589, %v588
        %v619 = vpack.c.b16 %v591, %v590
        %v620 = vpack.c.b16 %v593, %v592
        %v621 = vpack.c.b16 %v595, %v594
        %v622 = vpack.c.b16 %v597, %v596
        %v623 = vpack.c.b16 %v599, %v598
        %v624 = vpack.c.b16 %v601, %v600
        %v625 = vpack.c.b16 %v603, %v602
        %v626 = vpack.c.b16 %v605, %v604
        %v627 = vpack.c.b16 %v607, %v606
        %v628 = vpack.c.b16 %v609, %v608
        %v629 = vpack.c.b16 %v611, %v610
        %v630 = vpack.c.b16 %v613, %v612
        %v631 = vpack.c.b16 %v615, %v614
        %648 = vmatprep.subr.bf16.mxu0 0
        %649 = vmatpush1.bf16.msra.mxu0 %v623
        %650 = vmatprep.subr.bf16.mxu0 0
        %651 = vmatpush1.bf16.msra.mxu0 %v622
        %652 = vmatprep.subr.bf16.mxu0 0
        %653 = vmatpush1.bf16.msra.mxu0 %v621
        %654 = vmatprep.subr.bf16.mxu0 0
        %655 = vmatpush1.bf16.msra.mxu0 %v620
        %656 = vmatprep.subr.bf16.mxu0 0
        %657 = vmatpush1.bf16.msra.mxu0 %v619
        %658 = vmatprep.subr.bf16.mxu0 0
        %659 = vmatpush1.bf16.msra.mxu0 %v618
        %660 = vmatprep.subr.bf16.mxu0 0
        %661 = vmatpush1.bf16.msra.mxu0 %v617
        %662 = vmatprep.subr.bf16.mxu0 0
        %663 = vmatpush1.bf16.msra.mxu0 %v616
        %664 = vmatprep.subr.bf16.mxu0 0
        %665 = vmatpush2.bf16.msra.mxu0 %v631
        %666 = vmatprep.subr.bf16.mxu0 0
        %667 = vmatpush2.bf16.msra.mxu0 %v630
        %668 = vmatprep.subr.bf16.mxu0 0
        %669 = vmatpush2.bf16.msra.mxu0 %v629
        %670 = vmatprep.subr.bf16.mxu0 0
        %671 = vmatpush2.bf16.msra.mxu0 %v628
        %672 = vmatprep.subr.bf16.mxu0 0
        %673 = vmatpush2.bf16.msra.mxu0 %v627
        %674 = vmatprep.subr.bf16.mxu0 0
        %675 = vmatpush2.bf16.msra.mxu0 %v626
        %676 = vmatprep.subr.bf16.mxu0 0
        %677 = vmatpush2.bf16.msra.mxu0 %v625
        %678 = vmatprep.subr.bf16.mxu0 0
        %679 = vmatpush2.bf16.msra.mxu0 %v624
        %680 = vmatprep.mubr.bf16.mxu0 %v519
        %681 = vmatmul.mubr.bf16.gmra.mxu0 %v518
        %v682 = vpop.f32.mrf.mxu0
        %v683 = vadd.f32 0.0, %v682
        %v684 = vpop.f32.mrf.mxu0
        %v685 = vpop.f32.mrf.mxu0
        %v686 = vadd.f32 0.0, %v685
        %v687 = vpop.f32.mrf.mxu0
        %688 = vdwg.mxu0
        %v689 = vadd.f32 %v516, %v683
        %v690 = vadd.f32 %v517, %v686
        %691 = vst [vmem:[#allocation2] sm:$0xff] %v689
        %692 = vst [vmem:[#allocation2 + $0x8] sm:$0xff] %v690
        %p693 = scmp.eq.s32.totalorder %s29, 1
        // Predicated region
        $region61: #{tpu_custom_call.1} parent=39 // pred_check
          %p694 = pneg %p693
        $region62: #{tpu_custom_call.1} parent=39 // pred_check_branch
          %696 = sbr.rel (%p694) target = $region64
        $region63: #{tpu_custom_call.1} parent=39 // pred_region
          %v697 = vld [vmem:[#allocation2] sm:$0xff]
          %v698 = vld [vmem:[#allocation2 + $0x8] sm:$0xff]
          %v699 = vld [vmem:[%s4] sm:$0x1]
          %v701 = vlaneseq
          %v702 = vshrl.u32 %v701, 7
          %v703 = vsub.s32 0, %v702
          %v704 = vrot.slane %v699, %v703
          %v706 = vadd.f32 %v697, %v704
          %v707 = vadd.f32 %v698, %v704
          %708 = vst [vmem:[#allocation11] sm:$0xff] %v706
          %709 = vst [vmem:[#allocation11 + $0x8] sm:$0xff] %v707
        $region64: #{tpu_custom_call.1} parent=39 // pred_fallthru
          _
        // Predicated region
        $region65: #{tpu_custom_call.1} parent=39 // pred_check
          %p710 = pneg %p179
        $region66: #{tpu_custom_call.1} parent=39 // pred_check_branch
          %712 = sbr.rel (%p710) target = $region68
        $region67: #{tpu_custom_call.1} parent=39 // pred_region
          %s713 = smul.u32 2, %s28
          %s715 = ssub.s32 256, 256
          %716 = vsyncadd [#allocation5], %s715
          %s717 = smul.addr %s713, 128
          %s718 = scalar_lea.hbm %s5, %s717
          %s719 = sshll.u32 [#allocation11], 4
          %s720 = int_to_ptr.vmem [resolvable:$true] %s719
          %725 = dma.vmem_to_hbm [thread:$0]  %s720, 256, %s718, [#allocation5], 128, 128, 8
        $region68: #{tpu_custom_call.1} parent=39 // pred_fallthru
          _
        // Predicated region
        $region69: #{tpu_custom_call.1} parent=39 // pred_check
          %p726 = pneg %p179
        $region70: #{tpu_custom_call.1} parent=39 // pred_check_branch
          %728 = sbr.rel (%p726) target = $region72
        $region71: #{tpu_custom_call.1} parent=39 // pred_region
          %729 = dma.done [#allocation5], 256
        $region72: #{tpu_custom_call.1} parent=39 // pred_fallthru
          _
      $region40: #{tpu_custom_call.1} parent=5 // pred_fallthru
        _
      %p730 = scmp.le.s32.totalorder 2, %s19
      // Predicated region
      $region73: #{tpu_custom_call.1} parent=5 // pred_check
        %p731 = pneg %p730
      $region74: #{tpu_custom_call.1} parent=5 // pred_check_branch
        %733 = sbr.rel (%p731) target = $region76
      $region75: #{tpu_custom_call.1} parent=5 // pred_region
        %s734 = ssub.s32 %s19, 2
      $region76: #{tpu_custom_call.1} parent=5 // pred_fallthru
        _
    $region6: #{tpu_custom_call.1} parent=1 // loop_footer
      %s23 = sadd.s32 1, %s19
    $region7: #{tpu_custom_call.1} parent=1 // loop_footer_branch
      %18 = sbr.rel target = $region3
    $region8: #{tpu_custom_call.1} parent=1 // loop_exit
      _
    %735 = vsyncpa [#allocation4], 1
    %s736 = scalar_lea.sflag [#allocation4], 1
    %737 = vsyncpa %s736, 1
    %738 = vsyncpa [#allocation7], 1
    %s739 = scalar_lea.sflag [#allocation7], 1
    %740 = vsyncpa %s739, 1
    %741 = vsyncpa [#allocation10], 1
    %s742 = scalar_lea.sflag [#allocation10], 1
    %743 = vsyncpa %s742, 1
    %744 = vsyncpa [#allocation5], 1
    %s745 = scalar_lea.sflag [#allocation5], 1
    %746 = vsyncpa %s745, 1

</llo_original>
